<compile_context>
chip_gen: v7x
topology: tpu7x:2x2x1
jax: 0.10.0
libtpu: 0.0.40
codegen_flags: <defaults>
</compile_context>

<pallas_src>
import functools

import jax
import jax.numpy as jnp
from jax.experimental import pallas as pl
from jax.experimental.pallas import tpu as pltpu


def _conv_relu_kernel(x_ref, w_ref, o_ref, *, W, KH, KW):
    # x_ref: (1, Cin_p, H*W)      one image; channels on sublanes, H*W on lanes
    # w_ref: (Cout, KH*KW*Cin_p)  pre-packed weight, VMEM resident across steps
    # o_ref: (1, Cout, H*W)       lane-dense output block
    HW = x_ref.shape[2]
    xb = x_ref[0]                                    # (Cin_p, HW)

    # im2col-free tap stack: output flat position p needs input position p + kh*W + kw,
    # which for every *valid* p stays inside the image, so a lane-roll by HW - s
    # (== shift by -s) yields the shifted row; wrap-around only lands on positions the
    # wrapper slices away.  Rolls run on the XLU and don't consume VALU/MXU slots.
    taps = []
    for kh in range(KH):
        for kw in range(KW):
            s = kh * W + kw
            taps.append(xb if s == 0 else pltpu.roll(xb, HW - s, axis=1))
    # Blocks are sublane-aligned (Cin_p multiple of 8/16), so this concat is just
    # vreg placement -- no relayout, no reshapes anywhere in the kernel.
    xs = jnp.concatenate(taps, axis=0)               # (KH*KW*Cin_p, HW)

    # Single MXU matmul with K = KH*KW*Cin_p, f32 accumulation, lane-dense result.
    acc = jnp.dot(w_ref[...], xs, preferred_element_type=jnp.float32)  # (Cout, HW)
    acc = jnp.maximum(acc, 0.0)                      # ReLU (f32 on the VPU)
    # TODO(synk): nn.Dropout(0.01) is identity in eval mode; training-mode dropout
    # with torch-matching RNG is not reproduced here.
    o_ref[0] = acc.astype(o_ref.dtype)


def conv_block_forward(x_nchw, weight_oihw, *, use_bf16=False):
    """conv_block forward: Conv2d(KHxKW, pad=0, no bias) -> ReLU -> Dropout(eval).

    x_nchw:      (N, Cin, H, W) float32
    weight_oihw: (Cout, Cin, KH, KW) float32 (PyTorch Conv2d layout)
    returns:     (N, Cout, H-KH+1, W-KW+1) float32
    """
    N, Cin, H, W = x_nchw.shape
    Cout, Cin_w, KH, KW = weight_oihw.shape
    assert Cin == Cin_w
    Hout, Wout = H - KH + 1, W - KW + 1
    HW = H * W

    compute_dtype = jnp.bfloat16 if use_bf16 else x_nchw.dtype
    # Sublane granularity: 8 rows for 32-bit dtypes, 16 for 16-bit (packed) dtypes.
    sub = 8 * (4 // jnp.dtype(compute_dtype).itemsize)
    Cin_p = max(sub, ((Cin + sub - 1) // sub) * sub)
    K = KH * KW * Cin_p

    # Free reshape (merges trailing contiguous dims): puts H*W on the lane axis.
    x_flat = x_nchw.reshape(N, Cin, HW)
    if Cin_p != Cin:
        x_flat = jnp.pad(x_flat, ((0, 0), (0, Cin_p - Cin), (0, 0)))  # tiny HBM pad
    x_flat = x_flat.astype(compute_dtype)

    # One-time weight packing (288 floats): (Cout,Cin,KH,KW) -> (Cout,KH,KW,Cin_p)
    # -> (Cout, K) so column (kh*KW + kw)*Cin_p + ci matches the in-kernel tap order.
    w_p = jnp.transpose(weight_oihw, (0, 2, 3, 1))            # (Cout, KH, KW, Cin)
    if Cin_p != Cin:
        w_p = jnp.pad(w_p, ((0, 0), (0, 0), (0, 0), (0, Cin_p - Cin)))
    w2d = w_p.reshape(Cout, K).astype(compute_dtype)

    kernel = functools.partial(_conv_relu_kernel, W=W, KH=KH, KW=KW)

    out_flat = pl.pallas_call(
        kernel,
        out_shape=jax.ShapeDtypeStruct((N, Cout, HW), x_nchw.dtype),
        grid=(N,),
        in_specs=[
            pl.BlockSpec((1, Cin_p, HW), lambda b: (b, 0, 0)),
            pl.BlockSpec((Cout, K), lambda b: (0, 0)),   # constant map: stays resident
        ],
        out_specs=pl.BlockSpec((1, Cout, HW), lambda b: (b, 0, 0)),
        compiler_params=pltpu.CompilerParams(
            # Parallel grid of extent N>=2 lets both v7x TensorCores work;
            # measured no-op on single-core v5e/v6e.
            dimension_semantics=("parallel",),
        ),
    )(x_flat, w2d)

    # Valid conv outputs live at flat positions p = h*W + w with h < Hout, w < Wout:
    # free reshape back to (N, Cout, H, W), then slice the valid window (tiny copy).
    return out_flat.reshape(N, Cout, H, W)[:, :, :Hout, :Wout]


if __name__ == "__main__":
    key = jax.random.PRNGKey(0)
    kx, kw = jax.random.split(key)

    # Small shapes consistent with the module: N=2, Cin=4, Cout=8, H=W=16, 3x3 kernel.
    N, Cin, Cout, H, W, KH, KW = 2, 4, 8, 16, 16, 3, 3

    x = jax.random.normal(kx, (N, Cin, H, W), dtype=jnp.float32)
    fan_in = Cin * KH * KW
    bound = (1.0 / fan_in) ** 0.5
    weight = jax.random.uniform(
        kw, (Cout, Cin, KH, KW), dtype=jnp.float32, minval=-bound, maxval=bound
    )

    out = conv_block_forward(x, weight)   # f32 path (use_bf16=True for v6e/v7x DMA win)
    jax.block_until_ready(out)

    # Sanity check against plain-JAX reference (conv + relu).
    ref = jax.lax.conv_general_dilated(
        x, weight, window_strides=(1, 1), padding="VALID",
        dimension_numbers=("NCHW", "OIHW", "NCHW"),
    )
    ref = jnp.maximum(ref, 0.0)
    assert out.shape == (N, Cout, H - KH + 1, W - KW + 1)
    assert jnp.allclose(out, ref, atol=1e-4, rtol=1e-4)

    print("KERNEL_OK")
</pallas_src>

<mosaic_0001>
module attributes {stable_mosaic.version = 11 : i64} {
  func.func @_conv_relu_kernel(%arg0: i32, %arg1: memref<1x8x256xf32, #tpu.memory_space<vmem>>, %arg2: memref<8x72xf32, #tpu.memory_space<vmem>>, %arg3: memref<1x8x256xf32, #tpu.memory_space<vmem>>) attributes {dimension_semantics = [#tpu.dimension_semantics<parallel>], iteration_bounds = array<i64: 2>, scalar_prefetch = 0 : i64, scratch_operands = 0 : i64, tpu.core_type = #tpu.core_type<tc>, window_params = [{transform_indices = @transform_0, window_bounds = array<i64: 1, 8, 256>}, {pipeline_mode = #tpu.pipeline_mode<synchronous>, transform_indices = @transform_1, window_bounds = array<i64: 8, 72>}, {transform_indices = @transform_2, window_bounds = array<i64: 1, 8, 256>}]} {
    %c0 = arith.constant 0 : index
    %c0_0 = arith.constant 0 : index
    %c0_1 = arith.constant 0 : index
    %0 = vector.load %arg1[%c0, %c0_0, %c0_1] : memref<1x8x256xf32, #tpu.memory_space<vmem>>, vector<1x8x256xf32>
    %1 = vector.shape_cast %0 : vector<1x8x256xf32> to vector<8x256xf32>
    %c255_i32 = arith.constant 255 : i32
    %2 = tpu.dynamic_rotate %1 by %c255_i32 dim 1 : vector<8x256xf32>, i32 -> vector<8x256xf32>
    %c254_i32 = arith.constant 254 : i32
    %3 = tpu.dynamic_rotate %1 by %c254_i32 dim 1 : vector<8x256xf32>, i32 -> vector<8x256xf32>
    %c240_i32 = arith.constant 240 : i32
    %4 = tpu.dynamic_rotate %1 by %c240_i32 dim 1 : vector<8x256xf32>, i32 -> vector<8x256xf32>
    %c239_i32 = arith.constant 239 : i32
    %5 = tpu.dynamic_rotate %1 by %c239_i32 dim 1 : vector<8x256xf32>, i32 -> vector<8x256xf32>
    %c238_i32 = arith.constant 238 : i32
    %6 = tpu.dynamic_rotate %1 by %c238_i32 dim 1 : vector<8x256xf32>, i32 -> vector<8x256xf32>
    %c224_i32 = arith.constant 224 : i32
    %7 = tpu.dynamic_rotate %1 by %c224_i32 dim 1 : vector<8x256xf32>, i32 -> vector<8x256xf32>
    %c223_i32 = arith.constant 223 : i32
    %8 = tpu.dynamic_rotate %1 by %c223_i32 dim 1 : vector<8x256xf32>, i32 -> vector<8x256xf32>
    %c222_i32 = arith.constant 222 : i32
    %9 = tpu.dynamic_rotate %1 by %c222_i32 dim 1 : vector<8x256xf32>, i32 -> vector<8x256xf32>
    %10 = tpu.concatenate %1, %2, %3, %4, %5, %6, %7, %8, %9 in 0 : vector<8x256xf32>, vector<8x256xf32>, vector<8x256xf32>, vector<8x256xf32>, vector<8x256xf32>, vector<8x256xf32>, vector<8x256xf32>, vector<8x256xf32>, vector<8x256xf32> -> vector<72x256xf32>
    %c0_2 = arith.constant 0 : index
    %c0_3 = arith.constant 0 : index
    %11 = vector.load %arg2[%c0_2, %c0_3] : memref<8x72xf32, #tpu.memory_space<vmem>>, vector<8x72xf32>
    %cst = arith.constant dense<0.000000e+00> : vector<8x256xf32>
    %12 = tpu.matmul %11, %10, %cst {dimension_numbers = #tpu.dot_dimension_numbers<[1], [0], [0], [1], [0, 0, 1, 1], [], []>} : vector<8x72xf32>, vector<72x256xf32>, vector<8x256xf32> -> vector<8x256xf32>
    %cst_4 = arith.constant 0.000000e+00 : f32
    %13 = vector.broadcast %cst_4 : f32 to vector<8x256xf32>
    %14 = arith.maximumf %12, %13 : vector<8x256xf32>
    %c0_5 = arith.constant 0 : index
    %c0_6 = arith.constant 0 : index
    %c0_7 = arith.constant 0 : index
    %15 = vector.load %arg3[%c0_5, %c0_6, %c0_7] : memref<1x8x256xf32, #tpu.memory_space<vmem>>, vector<1x8x256xf32>
    %16 = vector.shape_cast %15 : vector<1x8x256xf32> to vector<8x256xf32>
    %17 = vector.shape_cast %14 : vector<8x256xf32> to vector<1x8x256xf32>
    tpu.vector_store %arg3[%c0_5, %c0_6, %c0_7], %17 {strides = array<i32>} : memref<1x8x256xf32, #tpu.memory_space<vmem>>, vector<1x8x256xf32>,
    return
  }
  func.func @transform_0(%arg0: i32) -> (i32, i32, i32) {
    %c0_i32 = arith.constant 0 : i32
    %c0_i32_0 = arith.constant 0 : i32
    %c0_i32_1 = arith.constant 0 : i32
    return %arg0, %c0_i32, %c0_i32_0 : i32, i32, i32
  }
  func.func @transform_1(%arg0: i32) -> (i32, i32) {
    %c0_i32 = arith.constant 0 : i32
    %c0_i32_0 = arith.constant 0 : i32
    %c0_i32_1 = arith.constant 0 : i32
    return %c0_i32, %c0_i32_0 : i32, i32
  }
  func.func @transform_2(%arg0: i32) -> (i32, i32, i32) {
    %c0_i32 = arith.constant 0 : i32
    %c0_i32_0 = arith.constant 0 : i32
    %c0_i32_1 = arith.constant 0 : i32
    return %arg0, %c0_i32, %c0_i32_0 : i32, i32, i32
  }
}

</mosaic_0001>

<llo_original>
// kernel: tpu_custom_call.1
$region0: #{tpu_custom_call.1}
  #allocation0 [shape = 'u32[]', space=smem, size = 0x4, offset = 0x4, fixed_abs, tag = 'smem constant byte address 0x4 - core index']
  #allocation1 [shape = 'u32[144,128]{1,0:T(1,128)}', space=vmem, size = 0x12000, scoped, tag = 'internal scratch']
  %s0 = inlined_call_operand.hbm [shape: f32[2,8,256], index: 0, kind: input, shape index: {}]
  %s1 = inlined_call_operand.hbm [shape: f32[8,72], index: 1, kind: input, shape index: {}]
  %s2 = inlined_call_operand.hbm [shape: f32[2,8,256], index: 2, kind: output, shape index: {}]
  %s3 = sld [smem:[#allocation0]]
  $region49: #{tpu_custom_call.1} parent=0
    _
  %s5 = ssub.s32 1, %s3
  %s6 = scalar_select 0, %s5, %s3
  $region1: #{tpu_custom_call.1} parent=0
    #allocation2 [shape = 'u8[16384]{0}', space=vmem, size = 0x4000, scoped, tag = 'input window, operand 0']
    #allocation3 [shape = 's32[2]{0}', space=sflag, size = 0x8, scoped, tag = 'scoped memory for tpu_custom_call.1']
    #allocation4 [shape = 's32[2]{0}', space=sflag, size = 0x8, scoped, tag = 'scoped memory for tpu_custom_call.1']
    #allocation5 [shape = 'u8[4096]{0}', space=vmem, size = 0x1000, scoped, tag = 'input window, operand 1, single buffered']
    #allocation6 [shape = 's32[1]{0}', space=sflag, size = 0x4, scoped, tag = 'scoped memory for tpu_custom_call.1']
    #allocation7 [shape = 'u8[16384]{0}', space=vmem, size = 0x4000, scoped, tag = 'output window, operand 0']
    %7 = vsyncpa [#allocation3], 0
    %s8 = scalar_lea.sflag [#allocation3], 1
    %9 = vsyncpa %s8, 0
    %10 = vsyncpa [#allocation6], 0
    %11 = vsyncpa [#allocation4], 0
    %s12 = scalar_lea.sflag [#allocation4], 1
    %13 = vsyncpa %s12, 0
    loop: start=0, step=1, limit=4
    $region2: #{tpu_custom_call.1} parent=1 // loop_pre_header
      _
    $region3: #{tpu_custom_call.1} parent=1 // loop_header
      %s15 = sphi 0, %s19
      %p16 = scmp.ge.s32.totalorder %s15, 4
      %s25 = sphi 0, %s27
      %s28 = sphi 0, %s25
      %s29 = sphi 0, %s28
      %s45 = sphi 0, %s29
      %s49 = sphi 0, %s49
      %s51 = sphi 0, %s49
      %s52 = sphi 0, %s51
      %s66 = sphi 0, %s52
      %s72 = sphi 0, %s74
      %s75 = sphi 0, %s72
      %s76 = sphi 0, %s75
      %s92 = sphi 0, %s76
    $region4: #{tpu_custom_call.1} parent=1 // loop_header_branch
      %18 = sbr.rel (%p16) target = $region8
    $region5: #{tpu_custom_call.1} parent=1 // loop_body
      %s20 = ssub.s32 %s15, 1
      %s21 = ssub.s32 %s15, 2
      %s22 = sadd.s32 %s15, 1
      %s23 = ssub.s32 %s15, %s22
      %p24 = scmp.eq.s32.totalorder %s23, 0
      %s26 = sadd.s32 %s25, 1
      %s27 = scalar_select %p24, %s25, %s26
      %p30 = pneg %p24
      %p31 = scmp.eq.s32.totalorder %s15, 1
      %p32 = por %p30, %p31
      %p33 = scmp.ne.s32.totalorder %s25, %s28
      %p34 = scmp.eq.s32.totalorder %s15, 0
      %p35 = por %p33, %p34
      %p36 = scmp.ne.s32.totalorder %s25, %s28
      %p37 = scmp.eq.s32.totalorder %s20, 1
      %p38 = por %p36, %p37
      %p39 = scmp.ne.s32.totalorder %s28, %s29
      %p40 = scmp.eq.s32.totalorder %s20, 0
      %p41 = por %p39, %p40
      %p42 = scmp.ne.s32.totalorder %s28, %s29
      %p43 = scmp.eq.s32.totalorder %s21, 1
      %p44 = por %p42, %p43
      %p46 = scmp.ne.s32.totalorder %s29, %s45
      %p47 = scmp.eq.s32.totalorder %s21, 0
      %p48 = por %p46, %p47
      %s50 = sadd.s32 %s49, 1
      %p53 = scmp.eq.s32.totalorder %s15, 1
      %p54 = scmp.ne.s32.totalorder %s49, %s51
      %p55 = scmp.eq.s32.totalorder %s15, 0
      %p56 = por %p54, %p55
      %p57 = scmp.ne.s32.totalorder %s49, %s51
      %p58 = scmp.eq.s32.totalorder %s20, 1
      %p59 = por %p57, %p58
      %p60 = scmp.ne.s32.totalorder %s51, %s52
      %p61 = scmp.eq.s32.totalorder %s20, 0
      %p62 = por %p60, %p61
      %p63 = scmp.ne.s32.totalorder %s51, %s52
      %p64 = scmp.eq.s32.totalorder %s21, 1
      %p65 = por %p63, %p64
      %p67 = scmp.ne.s32.totalorder %s52, %s66
      %p68 = scmp.eq.s32.totalorder %s21, 0
      %p69 = por %p67, %p68
      %s70 = ssub.s32 %s15, %s22
      %p71 = scmp.eq.s32.totalorder %s70, 0
      %s73 = sadd.s32 %s72, 1
      %s74 = scalar_select %p71, %s72, %s73
      %p77 = pneg %p71
      %p78 = scmp.eq.s32.totalorder %s15, 1
      %p79 = por %p77, %p78
      %p80 = scmp.ne.s32.totalorder %s72, %s75
      %p81 = scmp.eq.s32.totalorder %s15, 0
      %p82 = por %p80, %p81
      %p83 = scmp.ne.s32.totalorder %s72, %s75
      %p84 = scmp.eq.s32.totalorder %s20, 1
      %p85 = por %p83, %p84
      %p86 = scmp.ne.s32.totalorder %s75, %s76
      %p87 = scmp.eq.s32.totalorder %s20, 0
      %p88 = por %p86, %p87
      %p89 = scmp.ne.s32.totalorder %s75, %s76
      %p90 = scmp.eq.s32.totalorder %s21, 1
      %p91 = por %p89, %p90
      %p93 = scmp.ne.s32.totalorder %s76, %s92
      %p94 = scmp.eq.s32.totalorder %s21, 0
      %p95 = por %p93, %p94
      %p96 = scmp.le.s32.totalorder 1, %s15
      %p97 = scmp.lt.s32.totalorder %s15, 3
      %p98 = pnand %p96, %p97
      %p99 = pneg %p98
      // Predicated region
      $region9: #{tpu_custom_call.1} parent=5 // pred_check
        _
      $region10: #{tpu_custom_call.1} parent=5 // pred_check_branch
        %101 = sbr.rel (%p98) target = $region12
      $region11: #{tpu_custom_call.1} parent=5 // pred_region
        %s102 = ssub.s32 %s15, 1
        // Predicated region
        $region13: #{tpu_custom_call.1} parent=11 // pred_check
          %p103 = pneg %p62
        $region14: #{tpu_custom_call.1} parent=11 // pred_check_branch
          %105 = sbr.rel (%p103) target = $region16
        $region15: #{tpu_custom_call.1} parent=11 // pred_region
          %s107 = ssub.s32 128, 128
          %108 = vsyncadd [#allocation6], %s107
          %s110 = sshll.u32 [#allocation5], 4
          %s111 = int_to_ptr.vmem [resolvable:$true] %s110
          %113 = dma.hbm_to_vmem [thread:$0]  %s1, 128, %s111, [#allocation6]
        $region16: #{tpu_custom_call.1} parent=11 // pred_fallthru
          _
      $region12: #{tpu_custom_call.1} parent=5 // pred_fallthru
        _
      %p114 = scmp.lt.s32.totalorder %s15, 2
      // Predicated region
      $region17: #{tpu_custom_call.1} parent=5 // pred_check
        %p115 = pneg %p114
      $region18: #{tpu_custom_call.1} parent=5 // pred_check_branch
        %117 = sbr.rel (%p115) target = $region20
      $region19: #{tpu_custom_call.1} parent=5 // pred_region
        // Predicated region
        $region21: #{tpu_custom_call.1} parent=19 // pred_check
          %p118 = pneg %p35
        $region22: #{tpu_custom_call.1} parent=19 // pred_check_branch
          %120 = sbr.rel (%p118) target = $region24
        $region23: #{tpu_custom_call.1} parent=19 // pred_region
          %s121 = sand.u32 %s25, 1
          %s122 = scalar_lea.sflag [#allocation3], %s121
          %s123 = sand.u32 %s25, 1
          %s124 = smul.addr %s123, 16
          %s125 = scalar_lea.vmem [#allocation2], %s124
          %s127 = ssub.s32 256, 256
          %128 = vsyncadd %s122, %s127
          %s129 = smul.addr %s15, 2
          %s130 = smul.addr %s129, 128
          %s131 = scalar_lea.hbm %s0, %s130
          %s133 = sshll.u32 %s125, 4
          %s134 = int_to_ptr.vmem [resolvable:$true] %s133
          %136 = dma.hbm_to_vmem [thread:$0]  %s131, 256, %s134, %s122
        $region24: #{tpu_custom_call.1} parent=19 // pred_fallthru
          _
      $region20: #{tpu_custom_call.1} parent=5 // pred_fallthru
        _
      %p137 = scmp.le.s32.totalorder 1, %s15
      %p138 = scmp.lt.s32.totalorder %s15, 3
      %p139 = pnand %p137, %p138
      %p140 = pneg %p139
      // Predicated region
      $region25: #{tpu_custom_call.1} parent=5 // pred_check
        _
      $region26: #{tpu_custom_call.1} parent=5 // pred_check_branch
        %142 = sbr.rel (%p139) target = $region28
      $region27: #{tpu_custom_call.1} parent=5 // pred_region
        %s143 = ssub.s32 %s15, 1
        %s144 = sand.u32 %s28, 1
        %s145 = scalar_lea.sflag [#allocation3], %s144
        %s146 = sand.u32 %s28, 1
        %s147 = smul.addr %s146, 16
        %s148 = scalar_lea.vmem [#allocation2], %s147
        // Predicated region
        $region29: #{tpu_custom_call.1} parent=27 // pred_check
          %p149 = pneg %p41
        $region30: #{tpu_custom_call.1} parent=27 // pred_check_branch
          %151 = sbr.rel (%p149) target = $region32
        $region31: #{tpu_custom_call.1} parent=27 // pred_region
          %152 = dma.done %s145, 256
        $region32: #{tpu_custom_call.1} parent=27 // pred_fallthru
          _
        // Predicated region
        $region33: #{tpu_custom_call.1} parent=27 // pred_check
          %p153 = pneg %p62
        $region34: #{tpu_custom_call.1} parent=27 // pred_check_branch
          %155 = sbr.rel (%p153) target = $region36
        $region35: #{tpu_custom_call.1} parent=27 // pred_region
          %156 = dma.done [#allocation6], 128
        $region36: #{tpu_custom_call.1} parent=27 // pred_fallthru
          _
        %s157 = sand.u32 %s28, 1
        %s158 = scalar_lea.sflag [#allocation3], %s157
        %s159 = sand.u32 %s28, 1
        %s160 = smul.addr %s159, 16
        %s161 = scalar_lea.vmem [#allocation2], %s160
        %p162 = pneg %p41
        %p163 = pneg %p38
        %p164 = pneg %p62
        %p165 = pneg %p59
        %p166 = pneg %p88
        %p167 = pneg %p85
        %s168 = sand.u32 %s75, 1
        %s169 = scalar_lea.sflag [#allocation4], %s168
        %s170 = sand.u32 %s75, 1
        %s171 = smul.addr %s170, 16
        %s172 = scalar_lea.vmem [#allocation7], %s171
        %v173 = vld [vmem:[%s148] sm:$0xff]
        %v174 = vld [vmem:[%s148 + $0x8] sm:$0xff]
        %175 = vrot.lane.b32.xlu0 %v173, 127
        %v176 = vpop.permute.xlu0 %175
        %177 = vrot.lane.b32.xlu0 %v174, 127
        %v178 = vpop.permute.xlu0 %177
        %v179 = vlaneseq
        %v180 = vand.u32 %v179, 127
        %vm181 = vcmp.lt.s32.totalorder %v180, 127
        %v182 = vsel %vm181, %v176, %v178
        %v183 = vsel %vm181, %v178, %v176
        %184 = vrot.lane.b32.xlu0 %v173, 126
        %v185 = vpop.permute.xlu0 %184
        %186 = vrot.lane.b32.xlu0 %v174, 126
        %v187 = vpop.permute.xlu0 %186
        %vm188 = vcmp.lt.s32.totalorder %v180, 126
        %v189 = vsel %vm188, %v185, %v187
        %v190 = vsel %vm188, %v187, %v185
        %191 = vrot.lane.b32.xlu0 %v173, 112
        %v192 = vpop.permute.xlu0 %191
        %193 = vrot.lane.b32.xlu0 %v174, 112
        %v194 = vpop.permute.xlu0 %193
        %vm195 = vcmp.lt.s32.totalorder %v180, 112
        %v196 = vsel %vm195, %v192, %v194
        %v197 = vsel %vm195, %v194, %v192
        %198 = vrot.lane.b32.xlu0 %v173, 111
        %v199 = vpop.permute.xlu0 %198
        %200 = vrot.lane.b32.xlu0 %v174, 111
        %v201 = vpop.permute.xlu0 %200
        %vm202 = vcmp.lt.s32.totalorder %v180, 111
        %v203 = vsel %vm202, %v199, %v201
        %v204 = vsel %vm202, %v201, %v199
        %205 = vrot.lane.b32.xlu0 %v173, 110
        %v206 = vpop.permute.xlu0 %205
        %207 = vrot.lane.b32.xlu0 %v174, 110
        %v208 = vpop.permute.xlu0 %207
        %vm209 = vcmp.lt.s32.totalorder %v180, 110
        %v210 = vsel %vm209, %v206, %v208
        %v211 = vsel %vm209, %v208, %v206
        %212 = vrot.lane.b32.xlu0 %v173, 96
        %v213 = vpop.permute.xlu0 %212
        %214 = vrot.lane.b32.xlu0 %v174, 96
        %v215 = vpop.permute.xlu0 %214
        %vm216 = vcmp.lt.s32.totalorder %v180, 96
        %v217 = vsel %vm216, %v213, %v215
        %v218 = vsel %vm216, %v215, %v213
        %219 = vrot.lane.b32.xlu0 %v173, 95
        %v220 = vpop.permute.xlu0 %219
        %221 = vrot.lane.b32.xlu0 %v174, 95
        %v222 = vpop.permute.xlu0 %221
        %vm223 = vcmp.lt.s32.totalorder %v180, 95
        %v224 = vsel %vm223, %v220, %v222
        %v225 = vsel %vm223, %v222, %v220
        %226 = vrot.lane.b32.xlu0 %v173, 94
        %v227 = vpop.permute.xlu0 %226
        %228 = vrot.lane.b32.xlu0 %v174, 94
        %v229 = vpop.permute.xlu0 %228
        %vm230 = vcmp.lt.s32.totalorder %v180, 94
        %v231 = vsel %vm230, %v227, %v229
        %v232 = vsel %vm230, %v229, %v227
        %v233 = vld [vmem:[#allocation5] sm:$0xff]
        %vm234 = vcmask 588800
        %v236 = vsel %vm234, %v233, 0
        %238 = vmatprep.subr.mxu0 %v174
        %239 = vmatpush1.msra.mxu0 %v173
        %240 = vmatprep.subr.mxu0 %v183
        %241 = vmatpush1.msra.mxu0 %v182
        %242 = vmatprep.subr.mxu0 %v190
        %243 = vmatpush1.msra.mxu0 %v189
        %244 = vmatprep.subr.mxu0 %v197
        %245 = vmatpush1.msra.mxu0 %v196
        %246 = vmatprep.subr.mxu0 %v204
        %247 = vmatpush1.msra.mxu0 %v203
        %248 = vmatprep.subr.mxu0 %v211
        %249 = vmatpush1.msra.mxu0 %v210
        %250 = vmatprep.subr.mxu0 %v218
        %251 = vmatpush1.msra.mxu0 %v217
        %252 = vmatprep.subr.mxu0 %v225
        %253 = vmatpush1.msra.mxu0 %v224
        %254 = vmatprep.subr.mxu0 %v232
        %255 = vmatpush1.msra.mxu0 %v231
        %256 = vmatprep.subr.mxu0 0.0
        %257 = vmatpush1.msra.mxu0 0.0
        %258 = vmatprep.subr.mxu0 0.0
        %259 = vmatpush1.msra.mxu0 0.0
        %260 = vmatprep.subr.mxu0 0.0
        %261 = vmatpush1.msra.mxu0 0.0
        %262 = vmatprep.subr.mxu0 0.0
        %263 = vmatpush1.msra.mxu0 0.0
        %264 = vmatprep.subr.mxu0 0.0
        %265 = vmatpush1.msra.mxu0 0.0
        %266 = vmatprep.subr.mxu0 0.0
        %267 = vmatpush1.msra.mxu0 0.0
        %268 = vmatprep.subr.mxu0 0.0
        %269 = vmatpush1.msra.mxu0 0.0
        %270 = vmatprep.subr.mxu0 0.0
        %271 = vmatpush1.msra.mxu0 0.0
        %272 = vmatprep.subr.mxu0 0.0
        %273 = vmatpush1.msra.mxu0 0.0
        %274 = vmatprep.subr.mxu0 0.0
        %275 = vmatpush1.msra.mxu0 0.0
        %276 = vmatprep.subr.mxu0 0.0
        %277 = vmatpush1.msra.mxu0 0.0
        %278 = vmatprep.subr.mxu0 0.0
        %279 = vmatpush1.msra.mxu0 0.0
        %280 = vmatprep.subr.mxu0 0.0
        %281 = vmatpush1.msra.mxu0 0.0
        %282 = vmatprep.subr.mxu0 0.0
        %283 = vmatpush1.msra.mxu0 0.0
        %284 = vmatprep.subr.mxu0 0.0
        %285 = vmatpush1.msra.mxu0 0.0
        %286 = vmatprep.subr.mxu0 0.0
        %287 = vmatpush1.msra.mxu0 0.0
        %288 = vmatprep.subr.mxu0 0.0
        %289 = vmatpush1.msra.mxu0 0.0
        %290 = vmatprep.subr.mxu0 0.0
        %291 = vmatpush1.msra.mxu0 0.0
        %292 = vmatprep.subr.mxu0 0.0
        %293 = vmatpush1.msra.mxu0 0.0
        %294 = vmatprep.subr.mxu0 0.0
        %295 = vmatpush1.msra.mxu0 0.0
        %296 = vmatprep.subr.mxu0 0.0
        %297 = vmatpush1.msra.mxu0 0.0
        %298 = vmatprep.subr.mxu0 0.0
        %299 = vmatpush1.msra.mxu0 0.0
        %300 = vmatprep.subr.mxu0 0.0
        %301 = vmatpush1.msra.mxu0 0.0
        %302 = vmatprep.mubr.f32.mxu0 0.0
        %303 = vmatmul.mubr.f32.gmra.mrb[0].mxu0 %v236
        %v304 = vpop.f32.mrb[0].mxu0
        %v305 = vadd.f32 0.0, %v304
        %v306 = vpop.f32.mrb[0].mxu0
        %v307 = vadd.f32 0.0, %v306
        %308 = vdwg.mxu0
        %v309 = vmax.f32 %v305, 0.0
        %v310 = vmax.f32 %v307, 0.0
        %311 = vst [vmem:[%s172] sm:$0xff] %v309
        %312 = vst [vmem:[%s172 + $0x8] sm:$0xff] %v310
        %s313 = sand.u32 %s75, 1
        %s314 = scalar_lea.sflag [#allocation4], %s313
        %s315 = sand.u32 %s75, 1
        %s316 = smul.addr %s315, 16
        %s317 = scalar_lea.vmem [#allocation7], %s316
        // Predicated region
        $region37: #{tpu_custom_call.1} parent=27 // pred_check
          %p318 = pneg %p85
        $region38: #{tpu_custom_call.1} parent=27 // pred_check_branch
          %320 = sbr.rel (%p318) target = $region40
        $region39: #{tpu_custom_call.1} parent=27 // pred_region
          %s322 = ssub.s32 256, 256
          %323 = vsyncadd %s314, %s322
          %s324 = smul.addr %s20, 2
          %s325 = smul.addr %s324, 128
          %s326 = scalar_lea.hbm %s2, %s325
          %s328 = sshll.u32 %s317, 4
          %s329 = int_to_ptr.vmem [resolvable:$true] %s328
          %331 = dma.vmem_to_hbm [thread:$0]  %s329, 256, %s326, %s314
        $region40: #{tpu_custom_call.1} parent=27 // pred_fallthru
          _
      $region28: #{tpu_custom_call.1} parent=5 // pred_fallthru
        _
      %p332 = scmp.le.s32.totalorder 2, %s15
      // Predicated region
      $region41: #{tpu_custom_call.1} parent=5 // pred_check
        %p333 = pneg %p332
      $region42: #{tpu_custom_call.1} parent=5 // pred_check_branch
        %335 = sbr.rel (%p333) target = $region44
      $region43: #{tpu_custom_call.1} parent=5 // pred_region
        %s336 = ssub.s32 %s15, 2
        // Predicated region
        $region45: #{tpu_custom_call.1} parent=43 // pred_check
          %p337 = pneg %p91
        $region46: #{tpu_custom_call.1} parent=43 // pred_check_branch
          %339 = sbr.rel (%p337) target = $region48
        $region47: #{tpu_custom_call.1} parent=43 // pred_region
          %s340 = sand.u32 %s76, 1
          %s341 = scalar_lea.sflag [#allocation4], %s340
          %s342 = sand.u32 %s76, 1
          %s343 = smul.addr %s342, 16
          %s344 = scalar_lea.vmem [#allocation7], %s343
          %345 = dma.done %s341, 256
        $region48: #{tpu_custom_call.1} parent=43 // pred_fallthru
          _
      $region44: #{tpu_custom_call.1} parent=5 // pred_fallthru
        _
    $region6: #{tpu_custom_call.1} parent=1 // loop_footer
      %s19 = sadd.s32 1, %s15
    $region7: #{tpu_custom_call.1} parent=1 // loop_footer_branch
      %14 = sbr.rel target = $region3
    $region8: #{tpu_custom_call.1} parent=1 // loop_exit
      _
    %346 = vsyncpa [#allocation3], 1
    %s347 = scalar_lea.sflag [#allocation3], 1
    %348 = vsyncpa %s347, 1
    %349 = vsyncpa [#allocation6], 1
    %350 = vsyncpa [#allocation4], 1
    %s351 = scalar_lea.sflag [#allocation4], 1
    %352 = vsyncpa %s351, 1

</llo_original>
